<compile_context>
chip_gen: v7x
topology: tpu7x:2x2x1
jax: 0.10.0
libtpu: 0.0.40
codegen_flags: <defaults>
</compile_context>

<pallas_src>
import jax
import jax.numpy as jnp
from jax.experimental import pallas as pl
from jax.experimental.pallas import tpu as pltpu

# ---- problem sizes (small, consistent with the module: in_ch=4 -> out_ch=8, 3x3, padding=0) ----
N, C_IN, H, W = 2, 4, 16, 16
C_OUT = 8
K = 3
EPS = 1e-5
NEG_SLOPE = 0.1

OH1, OW1 = H - K + 1, W - K + 1        # 14, 14  (after first conv)
OH2, OW2 = OH1 - K + 1, OW1 - K + 1    # 12, 12  (after second conv)
R = N * H * W                          # 512 flattened spatial positions (lane axis, 4x128)
SHIFTS = tuple(kh * W + kw for kh in range(K) for kw in range(K))   # 0,1,2,16,...,34
INV_CNT1 = 1.0 / float(N * OH1 * OW1)
INV_CNT2 = 1.0 / float(N * OH2 * OW2)


def _conv_block_kernel(xcol_ref, w1_ref, g1_ref, be1_ref,
                       w2_ref, g2_ref, be2_ref, m1_ref, m2_ref, o_ref):
    # -------- stage 1: conv1 as a single MXU matmul (8, 36) @ (36, 512) --------
    acc1 = jnp.dot(w1_ref[...], xcol_ref[...], preferred_element_type=jnp.float32)
    m1 = m1_ref[...]                                                  # (1, R) valid-output mask
    am1 = acc1 * m1
    mean1 = jnp.sum(am1, axis=1, keepdims=True) * INV_CNT1            # (Cout, 1)
    var1 = jnp.sum(am1 * acc1, axis=1, keepdims=True) * INV_CNT1 - mean1 * mean1
    y1 = (acc1 - mean1) * jax.lax.rsqrt(var1 + EPS) * g1_ref[...] + be1_ref[...]
    y1 = jnp.where(y1 > 0, y1, NEG_SLOPE * y1) * m1                   # LeakyReLU(0.1), zero invalid

    # -------- stage 2: im2col built in-register via XLU lane rolls, one matmul --------
    # tap_val[ci, r] = y1[ci, r + s]  (wrapped lanes land only on masked-out positions)
    taps = [y1 if s == 0 else pltpu.roll(y1, R - s, axis=1) for s in SHIFTS]
    ycol = jnp.concatenate(taps, axis=0)                              # (9*Cout, R) = (72, 512)

    acc2 = jnp.dot(w2_ref[...], ycol, preferred_element_type=jnp.float32)
    m2 = m2_ref[...]
    am2 = acc2 * m2
    mean2 = jnp.sum(am2, axis=1, keepdims=True) * INV_CNT2
    var2 = jnp.sum(am2 * acc2, axis=1, keepdims=True) * INV_CNT2 - mean2 * mean2
    y2 = (acc2 - mean2) * jax.lax.rsqrt(var2 + EPS) * g2_ref[...] + be2_ref[...]
    o_ref[...] = jnp.where(y2 > 0, y2, NEG_SLOPE * y2)                # lane-dense (8, 512) store


@jax.jit
def convolution_block(x_nchw, w1, b1, g1, be1, w2, b2, g2, be2):
    """x_nchw: (N, C_IN, H, W) f32 -> (N, C_OUT, OH2, OW2) f32.

    b1/b2 are accepted to mirror the PyTorch module's parameters but never reach the
    kernel: a conv bias cancels exactly under train-mode BatchNorm's mean subtraction.
    """
    del b1, b2

    # (C_IN, R) with r = n*H*W + h*W + w  (spatial on lanes)
    x_flat = jnp.transpose(x_nchw, (1, 0, 2, 3)).astype(jnp.float32).reshape(C_IN, R)
    # stage-1 im2col (tap-major rows): row tap*C_IN + ci, lane r -> x[ci, r + shift(tap)]
    xcol = jnp.concatenate([jnp.roll(x_flat, -s, axis=1) for s in SHIFTS], axis=0)  # (36, R)

    # weights: HWIO (kh, kw, ci, co) -> (Cout, 9*Cin) / (Cout, 9*Cout), column = tap*Cin + ci
    w1_mat = w1.reshape(K * K * C_IN, C_OUT).astype(jnp.float32).T
    w2_mat = w2.reshape(K * K * C_OUT, C_OUT).astype(jnp.float32).T
    col = lambda v: v.reshape(C_OUT, 1).astype(jnp.float32)

    # validity masks for the two VALID-conv outputs (static shapes -> constant-folded by XLA)
    r_idx = jnp.arange(R)
    hh = (r_idx % (H * W)) // W
    ww = r_idx % W
    m1 = ((hh < OH1) & (ww < OW1)).astype(jnp.float32).reshape(1, R)
    m2 = ((hh < OH2) & (ww < OW2)).astype(jnp.float32).reshape(1, R)

    vmem = pl.BlockSpec(memory_space=pltpu.MemorySpace.VMEM)
    out_flat = pl.pallas_call(
        _conv_block_kernel,
        out_shape=jax.ShapeDtypeStruct((C_OUT, R), jnp.float32),
        in_specs=[vmem] * 9,
        out_specs=vmem,
    )(xcol, w1_mat, col(g1), col(be1), w2_mat, col(g2), col(be2), m1, m2)

    # (Cout, R) -> (Cout, N, H, W) -> crop valid region -> NCHW
    out = out_flat.reshape(C_OUT, N, H, W)[:, :, :OH2, :OW2]
    return jnp.transpose(out, (1, 0, 2, 3))


def _reference(x_nchw, w1, b1, g1, be1, w2, b2, g2, be2):
    """Pure-JAX reference matching PyTorch Conv2d + train-mode BatchNorm2d + LeakyReLU(0.1)."""
    def stage(x_nhwc, w, b, g, be):
        y = jax.lax.conv_general_dilated(
            x_nhwc, w, (1, 1), 'VALID',
            dimension_numbers=('NHWC', 'HWIO', 'NHWC')) + b
        mean = jnp.mean(y, axis=(0, 1, 2), keepdims=True)
        var = jnp.mean((y - mean) ** 2, axis=(0, 1, 2), keepdims=True)
        y = (y - mean) * jax.lax.rsqrt(var + EPS) * g + be
        return jnp.where(y > 0, y, NEG_SLOPE * y)

    x = jnp.transpose(x_nchw, (0, 2, 3, 1))
    y = stage(x, w1, b1, g1, be1)
    y = stage(y, w2, b2, g2, be2)
    return jnp.transpose(y, (0, 3, 1, 2))


if __name__ == "__main__":
    key = jax.random.PRNGKey(0)
    k_w1, k_b1, k_w2, k_b2, k_x = jax.random.split(key, 5)

    fan1 = C_IN * K * K
    fan2 = C_OUT * K * K
    # Conv weights in HWIO layout (kh, kw, cin, cout); BN gamma=1, beta=0 (PyTorch defaults).
    w1 = jax.random.uniform(k_w1, (K, K, C_IN, C_OUT), jnp.float32, -1.0, 1.0) / jnp.sqrt(fan1)
    b1 = jax.random.uniform(k_b1, (C_OUT,), jnp.float32, -1.0, 1.0) / jnp.sqrt(fan1)
    w2 = jax.random.uniform(k_w2, (K, K, C_OUT, C_OUT), jnp.float32, -1.0, 1.0) / jnp.sqrt(fan2)
    b2 = jax.random.uniform(k_b2, (C_OUT,), jnp.float32, -1.0, 1.0) / jnp.sqrt(fan2)
    g1 = jnp.ones((C_OUT,), jnp.float32)
    be1 = jnp.zeros((C_OUT,), jnp.float32)
    g2 = jnp.ones((C_OUT,), jnp.float32)
    be2 = jnp.zeros((C_OUT,), jnp.float32)

    x = jax.random.normal(k_x, (N, C_IN, H, W), jnp.float32)

    out = convolution_block(x, w1, b1, g1, be1, w2, b2, g2, be2)
    out = jax.block_until_ready(out)

    ref = _reference(x, w1, b1, g1, be1, w2, b2, g2, be2)
    assert out.shape == (N, C_OUT, OH2, OW2), out.shape
    assert bool(jnp.all(jnp.isfinite(out)))
    assert bool(jnp.allclose(out, ref, atol=1e-2, rtol=1e-2)), \
        float(jnp.max(jnp.abs(out - ref)))

    print("KERNEL_OK")
</pallas_src>

<mosaic_0001>
module attributes {stable_mosaic.version = 11 : i64} {
  func.func @_conv_block_kernel(%arg0: memref<36x512xf32, #tpu.memory_space<vmem>>, %arg1: memref<8x36xf32, #tpu.memory_space<vmem>>, %arg2: memref<8x1xf32, #tpu.memory_space<vmem>>, %arg3: memref<8x1xf32, #tpu.memory_space<vmem>>, %arg4: memref<8x72xf32, #tpu.memory_space<vmem>>, %arg5: memref<8x1xf32, #tpu.memory_space<vmem>>, %arg6: memref<8x1xf32, #tpu.memory_space<vmem>>, %arg7: memref<1x512xf32, #tpu.memory_space<vmem>>, %arg8: memref<1x512xf32, #tpu.memory_space<vmem>>, %arg9: memref<8x512xf32, #tpu.memory_space<vmem>>) attributes {dimension_semantics = [], scalar_prefetch = 0 : i64, scratch_operands = 0 : i64, tpu.core_type = #tpu.core_type<tc>} {
    %c0 = arith.constant 0 : index
    %c0_0 = arith.constant 0 : index
    %0 = vector.load %arg1[%c0, %c0_0] : memref<8x36xf32, #tpu.memory_space<vmem>>, vector<8x36xf32>
    %c0_1 = arith.constant 0 : index
    %c0_2 = arith.constant 0 : index
    %1 = vector.load %arg0[%c0_1, %c0_2] : memref<36x512xf32, #tpu.memory_space<vmem>>, vector<36x512xf32>
    %cst = arith.constant dense<0.000000e+00> : vector<8x512xf32>
    %2 = tpu.matmul %0, %1, %cst {dimension_numbers = #tpu.dot_dimension_numbers<[1], [0], [0], [1], [0, 0, 1, 1], [], []>} : vector<8x36xf32>, vector<36x512xf32>, vector<8x512xf32> -> vector<8x512xf32>
    %c0_3 = arith.constant 0 : index
    %c0_4 = arith.constant 0 : index
    %3 = vector.load %arg7[%c0_3, %c0_4] : memref<1x512xf32, #tpu.memory_space<vmem>>, vector<1x512xf32>
    %4 = vector.broadcast %3 : vector<1x512xf32> to vector<8x512xf32>
    %5 = arith.mulf %2, %4 : vector<8x512xf32>
    %cst_5 = arith.constant dense<0.000000e+00> : vector<8xf32>
    %6 = vector.multi_reduction <add>, %5, %cst_5 [1] : vector<8x512xf32> to vector<8xf32>
    %7 = vector.shape_cast %6 : vector<8xf32> to vector<8x1xf32>
    %cst_6 = arith.constant 0.00255102036 : f32
    %8 = vector.broadcast %cst_6 : f32 to vector<8x1xf32>
    %9 = arith.mulf %7, %8 : vector<8x1xf32>
    %10 = arith.mulf %5, %2 : vector<8x512xf32>
    %cst_7 = arith.constant dense<0.000000e+00> : vector<8xf32>
    %11 = vector.multi_reduction <add>, %10, %cst_7 [1] : vector<8x512xf32> to vector<8xf32>
    %12 = vector.shape_cast %11 : vector<8xf32> to vector<8x1xf32>
    %cst_8 = arith.constant 0.00255102036 : f32
    %13 = vector.broadcast %cst_8 : f32 to vector<8x1xf32>
    %14 = arith.mulf %12, %13 : vector<8x1xf32>
    %15 = arith.mulf %9, %9 : vector<8x1xf32>
    %16 = arith.subf %14, %15 : vector<8x1xf32>
    %17 = vector.broadcast %9 : vector<8x1xf32> to vector<8x512xf32>
    %18 = arith.subf %2, %17 : vector<8x512xf32>
    %cst_9 = arith.constant 9.99999974E-6 : f32
    %19 = vector.broadcast %cst_9 : f32 to vector<8x1xf32>
    %20 = arith.addf %16, %19 : vector<8x1xf32>
    %21 = math.rsqrt %20 : vector<8x1xf32>
    %22 = vector.broadcast %21 : vector<8x1xf32> to vector<8x512xf32>
    %23 = arith.mulf %18, %22 : vector<8x512xf32>
    %c0_10 = arith.constant 0 : index
    %c0_11 = arith.constant 0 : index
    %24 = vector.load %arg2[%c0_10, %c0_11] : memref<8x1xf32, #tpu.memory_space<vmem>>, vector<8x1xf32>
    %25 = vector.broadcast %24 : vector<8x1xf32> to vector<8x512xf32>
    %26 = arith.mulf %23, %25 : vector<8x512xf32>
    %c0_12 = arith.constant 0 : index
    %c0_13 = arith.constant 0 : index
    %27 = vector.load %arg3[%c0_12, %c0_13] : memref<8x1xf32, #tpu.memory_space<vmem>>, vector<8x1xf32>
    %28 = vector.broadcast %27 : vector<8x1xf32> to vector<8x512xf32>
    %29 = arith.addf %26, %28 : vector<8x512xf32>
    %cst_14 = arith.constant 0.000000e+00 : f32
    %30 = vector.broadcast %cst_14 : f32 to vector<8x512xf32>
    %31 = arith.cmpf ogt, %29, %30 : vector<8x512xf32>
    %cst_15 = arith.constant 1.000000e-01 : f32
    %32 = vector.broadcast %cst_15 : f32 to vector<8x512xf32>
    %33 = arith.mulf %32, %29 : vector<8x512xf32>
    %34 = arith.select %31, %29, %33 : vector<8x512xi1>, vector<8x512xf32>
    %35 = vector.broadcast %3 : vector<1x512xf32> to vector<8x512xf32>
    %36 = arith.mulf %34, %35 : vector<8x512xf32>
    %c511_i32 = arith.constant 511 : i32
    %37 = tpu.dynamic_rotate %36 by %c511_i32 dim 1 : vector<8x512xf32>, i32 -> vector<8x512xf32>
    %c510_i32 = arith.constant 510 : i32
    %38 = tpu.dynamic_rotate %36 by %c510_i32 dim 1 : vector<8x512xf32>, i32 -> vector<8x512xf32>
    %c496_i32 = arith.constant 496 : i32
    %39 = tpu.dynamic_rotate %36 by %c496_i32 dim 1 : vector<8x512xf32>, i32 -> vector<8x512xf32>
    %c495_i32 = arith.constant 495 : i32
    %40 = tpu.dynamic_rotate %36 by %c495_i32 dim 1 : vector<8x512xf32>, i32 -> vector<8x512xf32>
    %c494_i32 = arith.constant 494 : i32
    %41 = tpu.dynamic_rotate %36 by %c494_i32 dim 1 : vector<8x512xf32>, i32 -> vector<8x512xf32>
    %c480_i32 = arith.constant 480 : i32
    %42 = tpu.dynamic_rotate %36 by %c480_i32 dim 1 : vector<8x512xf32>, i32 -> vector<8x512xf32>
    %c479_i32 = arith.constant 479 : i32
    %43 = tpu.dynamic_rotate %36 by %c479_i32 dim 1 : vector<8x512xf32>, i32 -> vector<8x512xf32>
    %c478_i32 = arith.constant 478 : i32
    %44 = tpu.dynamic_rotate %36 by %c478_i32 dim 1 : vector<8x512xf32>, i32 -> vector<8x512xf32>
    %45 = tpu.concatenate %36, %37, %38, %39, %40, %41, %42, %43, %44 in 0 : vector<8x512xf32>, vector<8x512xf32>, vector<8x512xf32>, vector<8x512xf32>, vector<8x512xf32>, vector<8x512xf32>, vector<8x512xf32>, vector<8x512xf32>, vector<8x512xf32> -> vector<72x512xf32>
    %c0_16 = arith.constant 0 : index
    %c0_17 = arith.constant 0 : index
    %46 = vector.load %arg4[%c0_16, %c0_17] : memref<8x72xf32, #tpu.memory_space<vmem>>, vector<8x72xf32>
    %cst_18 = arith.constant dense<0.000000e+00> : vector<8x512xf32>
    %47 = tpu.matmul %46, %45, %cst_18 {dimension_numbers = #tpu.dot_dimension_numbers<[1], [0], [0], [1], [0, 0, 1, 1], [], []>} : vector<8x72xf32>, vector<72x512xf32>, vector<8x512xf32> -> vector<8x512xf32>
    %c0_19 = arith.constant 0 : index
    %c0_20 = arith.constant 0 : index
    %48 = vector.load %arg8[%c0_19, %c0_20] : memref<1x512xf32, #tpu.memory_space<vmem>>, vector<1x512xf32>
    %49 = vector.broadcast %48 : vector<1x512xf32> to vector<8x512xf32>
    %50 = arith.mulf %47, %49 : vector<8x512xf32>
    %cst_21 = arith.constant dense<0.000000e+00> : vector<8xf32>
    %51 = vector.multi_reduction <add>, %50, %cst_21 [1] : vector<8x512xf32> to vector<8xf32>
    %52 = vector.shape_cast %51 : vector<8xf32> to vector<8x1xf32>
    %cst_22 = arith.constant 0.00347222225 : f32
    %53 = vector.broadcast %cst_22 : f32 to vector<8x1xf32>
    %54 = arith.mulf %52, %53 : vector<8x1xf32>
    %55 = arith.mulf %50, %47 : vector<8x512xf32>
    %cst_23 = arith.constant dense<0.000000e+00> : vector<8xf32>
    %56 = vector.multi_reduction <add>, %55, %cst_23 [1] : vector<8x512xf32> to vector<8xf32>
    %57 = vector.shape_cast %56 : vector<8xf32> to vector<8x1xf32>
    %cst_24 = arith.constant 0.00347222225 : f32
    %58 = vector.broadcast %cst_24 : f32 to vector<8x1xf32>
    %59 = arith.mulf %57, %58 : vector<8x1xf32>
    %60 = arith.mulf %54, %54 : vector<8x1xf32>
    %61 = arith.subf %59, %60 : vector<8x1xf32>
    %62 = vector.broadcast %54 : vector<8x1xf32> to vector<8x512xf32>
    %63 = arith.subf %47, %62 : vector<8x512xf32>
    %cst_25 = arith.constant 9.99999974E-6 : f32
    %64 = vector.broadcast %cst_25 : f32 to vector<8x1xf32>
    %65 = arith.addf %61, %64 : vector<8x1xf32>
    %66 = math.rsqrt %65 : vector<8x1xf32>
    %67 = vector.broadcast %66 : vector<8x1xf32> to vector<8x512xf32>
    %68 = arith.mulf %63, %67 : vector<8x512xf32>
    %c0_26 = arith.constant 0 : index
    %c0_27 = arith.constant 0 : index
    %69 = vector.load %arg5[%c0_26, %c0_27] : memref<8x1xf32, #tpu.memory_space<vmem>>, vector<8x1xf32>
    %70 = vector.broadcast %69 : vector<8x1xf32> to vector<8x512xf32>
    %71 = arith.mulf %68, %70 : vector<8x512xf32>
    %c0_28 = arith.constant 0 : index
    %c0_29 = arith.constant 0 : index
    %72 = vector.load %arg6[%c0_28, %c0_29] : memref<8x1xf32, #tpu.memory_space<vmem>>, vector<8x1xf32>
    %73 = vector.broadcast %72 : vector<8x1xf32> to vector<8x512xf32>
    %74 = arith.addf %71, %73 : vector<8x512xf32>
    %cst_30 = arith.constant 0.000000e+00 : f32
    %75 = vector.broadcast %cst_30 : f32 to vector<8x512xf32>
    %76 = arith.cmpf ogt, %74, %75 : vector<8x512xf32>
    %cst_31 = arith.constant 1.000000e-01 : f32
    %77 = vector.broadcast %cst_31 : f32 to vector<8x512xf32>
    %78 = arith.mulf %77, %74 : vector<8x512xf32>
    %79 = arith.select %76, %74, %78 : vector<8x512xi1>, vector<8x512xf32>
    %c0_32 = arith.constant 0 : index
    %c0_33 = arith.constant 0 : index
    %80 = vector.load %arg9[%c0_32, %c0_33] : memref<8x512xf32, #tpu.memory_space<vmem>>, vector<8x512xf32>
    tpu.vector_store %arg9[%c0_32, %c0_33], %79 {strides = array<i32>} : memref<8x512xf32, #tpu.memory_space<vmem>>, vector<8x512xf32>,
    return
  }
}

</mosaic_0001>

<llo_original>
// kernel: convolution_block.1
$region0: #{convolution_block.1}
  #allocation0 [shape = 'u32[]', space=smem, size = 0x4, offset = 0x4, fixed_abs, tag = 'smem constant byte address 0x4 - core index']
  #allocation1 [shape = 'u32[144,128]{1,0:T(1,128)}', space=vmem, size = 0x12000, scoped, tag = 'internal scratch']
  %s0 = inlined_call_operand.vmem [shape: f32[36,512], index: 0, kind: input, shape index: {}]
  %s1 = inlined_call_operand.vmem [shape: f32[8,36], index: 1, kind: input, shape index: {}]
  %s2 = inlined_call_operand.vmem [shape: f32[8,1], index: 2, kind: input, shape index: {}]
  %s3 = inlined_call_operand.vmem [shape: f32[8,1], index: 3, kind: input, shape index: {}]
  %s4 = inlined_call_operand.vmem [shape: f32[8,72], index: 4, kind: input, shape index: {}]
  %s5 = inlined_call_operand.vmem [shape: f32[8,1], index: 5, kind: input, shape index: {}]
  %s6 = inlined_call_operand.vmem [shape: f32[8,1], index: 6, kind: input, shape index: {}]
  %s7 = inlined_call_operand.vmem [shape: f32[1,512], index: 7, kind: input, shape index: {}]
  %s8 = inlined_call_operand.vmem [shape: f32[1,512], index: 8, kind: input, shape index: {}]
  %s9 = inlined_call_operand.vmem [shape: f32[8,512], index: 9, kind: output, shape index: {}]
  %s10 = sld [smem:[#allocation0]]
  $region46: #{convolution_block.1} parent=0
    _
  %s12 = ssub.s32 1, %s10
  %s13 = scalar_select 0, %s12, %s10
  // Predicated region
  $region2: #{convolution_block.1} parent=0 // pred_check
    _
  $region3: #{convolution_block.1} parent=0 // pred_check_branch
    %15 = sbr.rel (0) target = $region5
  $region4: #{convolution_block.1} parent=0 // pred_region
    _
  $region5: #{convolution_block.1} parent=0 // pred_fallthru
    _
  // Predicated region
  $region6: #{convolution_block.1} parent=0 // pred_check
    _
  $region7: #{convolution_block.1} parent=0 // pred_check_branch
    %17 = sbr.rel (0) target = $region9
  $region8: #{convolution_block.1} parent=0 // pred_region
    _
  $region9: #{convolution_block.1} parent=0 // pred_fallthru
    _
  // Predicated region
  $region10: #{convolution_block.1} parent=0 // pred_check
    _
  $region11: #{convolution_block.1} parent=0 // pred_check_branch
    %19 = sbr.rel (0) target = $region13
  $region12: #{convolution_block.1} parent=0 // pred_region
    _
  $region13: #{convolution_block.1} parent=0 // pred_fallthru
    _
  // Predicated region
  $region14: #{convolution_block.1} parent=0 // pred_check
    _
  $region15: #{convolution_block.1} parent=0 // pred_check_branch
    %21 = sbr.rel (0) target = $region17
  $region16: #{convolution_block.1} parent=0 // pred_region
    _
  $region17: #{convolution_block.1} parent=0 // pred_fallthru
    _
  // Predicated region
  $region18: #{convolution_block.1} parent=0 // pred_check
    _
  $region19: #{convolution_block.1} parent=0 // pred_check_branch
    %23 = sbr.rel (0) target = $region21
  $region20: #{convolution_block.1} parent=0 // pred_region
    _
  $region21: #{convolution_block.1} parent=0 // pred_fallthru
    _
  // Predicated region
  $region22: #{convolution_block.1} parent=0 // pred_check
    _
  $region23: #{convolution_block.1} parent=0 // pred_check_branch
    %25 = sbr.rel (0) target = $region25
  $region24: #{convolution_block.1} parent=0 // pred_region
    _
  $region25: #{convolution_block.1} parent=0 // pred_fallthru
    _
  // Predicated region
  $region26: #{convolution_block.1} parent=0 // pred_check
    _
  $region27: #{convolution_block.1} parent=0 // pred_check_branch
    %27 = sbr.rel (0) target = $region29
  $region28: #{convolution_block.1} parent=0 // pred_region
    _
  $region29: #{convolution_block.1} parent=0 // pred_fallthru
    _
  // Predicated region
  $region30: #{convolution_block.1} parent=0 // pred_check
    _
  $region31: #{convolution_block.1} parent=0 // pred_check_branch
    %29 = sbr.rel (0) target = $region33
  $region32: #{convolution_block.1} parent=0 // pred_region
    _
  $region33: #{convolution_block.1} parent=0 // pred_fallthru
    _
  // Predicated region
  $region34: #{convolution_block.1} parent=0 // pred_check
    _
  $region35: #{convolution_block.1} parent=0 // pred_check_branch
    %31 = sbr.rel (0) target = $region37
  $region36: #{convolution_block.1} parent=0 // pred_region
    _
  $region37: #{convolution_block.1} parent=0 // pred_fallthru
    _
  %v32 = vld [vmem:[%s1] sm:$0xff]
  %v33 = vld [vmem:[%s0] sm:$0xff]
  %v34 = vld [vmem:[%s0 + $0x8] sm:$0xff]
  %v35 = vld [vmem:[%s0 + $0x10] sm:$0xff]
  %v36 = vld [vmem:[%s0 + $0x18] sm:$0xff]
  %v37 = vld [vmem:[%s0 + $0x20] sm:$0xff]
  %v38 = vld [vmem:[%s0 + $0x28] sm:$0xff]
  %v39 = vld [vmem:[%s0 + $0x30] sm:$0xff]
  %v40 = vld [vmem:[%s0 + $0x38] sm:$0xff]
  %v41 = vld [vmem:[%s0 + $0x40] sm:$0xff]
  %v42 = vld [vmem:[%s0 + $0x48] sm:$0xff]
  %v43 = vld [vmem:[%s0 + $0x50] sm:$0xff]
  %v44 = vld [vmem:[%s0 + $0x58] sm:$0xff]
  %v45 = vld [vmem:[%s0 + $0x60] sm:$0xff]
  %v46 = vld [vmem:[%s0 + $0x68] sm:$0xff]
  %v47 = vld [vmem:[%s0 + $0x70] sm:$0xff]
  %v48 = vld [vmem:[%s0 + $0x78] sm:$0xff]
  %v49 = vld [vmem:[%s0 + $0x80] sm:$0xf]
  %v50 = vld [vmem:[%s0 + $0x88] sm:$0xf]
  %v51 = vld [vmem:[%s0 + $0x90] sm:$0xf]
  %v52 = vld [vmem:[%s0 + $0x98] sm:$0xf]
  %vm53 = vcmask 293888
  %v55 = vsel %vm53, %v32, 0
  %vm57 = vcmask 1043456
  %v59 = vsel %vm57, %v49, 0
  %v62 = vsel %vm57, %v50, 0
  %v65 = vsel %vm57, %v51, 0
  %v68 = vsel %vm57, %v52, 0
  %70 = vmatprep.subr.mxu0 %v34
  %71 = vmatpush1.msra.mxu0 %v33
  %72 = vmatprep.subr.mxu0 %v38
  %73 = vmatpush1.msra.mxu0 %v37
  %74 = vmatprep.subr.mxu0 %v42
  %75 = vmatpush1.msra.mxu0 %v41
  %76 = vmatprep.subr.mxu0 %v46
  %77 = vmatpush1.msra.mxu0 %v45
  %78 = vmatprep.subr.mxu0 %v62
  %79 = vmatpush1.msra.mxu0 %v59
  %80 = vmatprep.subr.mxu0 0.0
  %81 = vmatpush1.msra.mxu0 0.0
  %82 = vmatprep.subr.mxu0 0.0
  %83 = vmatpush1.msra.mxu0 0.0
  %84 = vmatprep.subr.mxu0 0.0
  %85 = vmatpush1.msra.mxu0 0.0
  %86 = vmatprep.subr.mxu0 0.0
  %87 = vmatpush1.msra.mxu0 0.0
  %88 = vmatprep.subr.mxu0 0.0
  %89 = vmatpush1.msra.mxu0 0.0
  %90 = vmatprep.subr.mxu0 0.0
  %91 = vmatpush1.msra.mxu0 0.0
  %92 = vmatprep.subr.mxu0 0.0
  %93 = vmatpush1.msra.mxu0 0.0
  %94 = vmatprep.subr.mxu0 0.0
  %95 = vmatpush1.msra.mxu0 0.0
  %96 = vmatprep.subr.mxu0 0.0
  %97 = vmatpush1.msra.mxu0 0.0
  %98 = vmatprep.subr.mxu0 0.0
  %99 = vmatpush1.msra.mxu0 0.0
  %100 = vmatprep.subr.mxu0 0.0
  %101 = vmatpush1.msra.mxu0 0.0
  %102 = vmatprep.subr.mxu0 0.0
  %103 = vmatpush1.msra.mxu0 0.0
  %104 = vmatprep.subr.mxu0 0.0
  %105 = vmatpush1.msra.mxu0 0.0
  %106 = vmatprep.subr.mxu0 0.0
  %107 = vmatpush1.msra.mxu0 0.0
  %108 = vmatprep.subr.mxu0 0.0
  %109 = vmatpush1.msra.mxu0 0.0
  %110 = vmatprep.subr.mxu0 0.0
  %111 = vmatpush1.msra.mxu0 0.0
  %112 = vmatprep.subr.mxu0 0.0
  %113 = vmatpush1.msra.mxu0 0.0
  %114 = vmatprep.subr.mxu0 0.0
  %115 = vmatpush1.msra.mxu0 0.0
  %116 = vmatprep.subr.mxu0 0.0
  %117 = vmatpush1.msra.mxu0 0.0
  %118 = vmatprep.subr.mxu0 0.0
  %119 = vmatpush1.msra.mxu0 0.0
  %120 = vmatprep.subr.mxu0 0.0
  %121 = vmatpush1.msra.mxu0 0.0
  %122 = vmatprep.subr.mxu0 0.0
  %123 = vmatpush1.msra.mxu0 0.0
  %124 = vmatprep.subr.mxu0 0.0
  %125 = vmatpush1.msra.mxu0 0.0
  %126 = vmatprep.subr.mxu0 0.0
  %127 = vmatpush1.msra.mxu0 0.0
  %128 = vmatprep.subr.mxu0 0.0
  %129 = vmatpush1.msra.mxu0 0.0
  %130 = vmatprep.subr.mxu0 0.0
  %131 = vmatpush1.msra.mxu0 0.0
  %132 = vmatprep.subr.mxu0 0.0
  %133 = vmatpush1.msra.mxu0 0.0
  %134 = vmatprep.mubr.f32.mxu0 0.0
  %135 = vmatmul.mubr.f32.gmra.mrb[0].mxu0 %v55
  %v136 = vpop.f32.mrb[0].mxu0
  %v137 = vadd.f32 0.0, %v136
  %v138 = vpop.f32.mrb[0].mxu0
  %v139 = vadd.f32 0.0, %v138
  %140 = vdwg.mxu0
  %141 = vmatprep.subr.mxu0 %v36
  %142 = vmatpush1.msra.mxu0 %v35
  %143 = vmatprep.subr.mxu0 %v40
  %144 = vmatpush1.msra.mxu0 %v39
  %145 = vmatprep.subr.mxu0 %v44
  %146 = vmatpush1.msra.mxu0 %v43
  %147 = vmatprep.subr.mxu0 %v48
  %148 = vmatpush1.msra.mxu0 %v47
  %149 = vmatprep.subr.mxu0 %v68
  %150 = vmatpush1.msra.mxu0 %v65
  %151 = vmatprep.subr.mxu0 0.0
  %152 = vmatpush1.msra.mxu0 0.0
  %153 = vmatprep.subr.mxu0 0.0
  %154 = vmatpush1.msra.mxu0 0.0
  %155 = vmatprep.subr.mxu0 0.0
  %156 = vmatpush1.msra.mxu0 0.0
  %157 = vmatprep.subr.mxu0 0.0
  %158 = vmatpush1.msra.mxu0 0.0
  %159 = vmatprep.subr.mxu0 0.0
  %160 = vmatpush1.msra.mxu0 0.0
  %161 = vmatprep.subr.mxu0 0.0
  %162 = vmatpush1.msra.mxu0 0.0
  %163 = vmatprep.subr.mxu0 0.0
  %164 = vmatpush1.msra.mxu0 0.0
  %165 = vmatprep.subr.mxu0 0.0
  %166 = vmatpush1.msra.mxu0 0.0
  %167 = vmatprep.subr.mxu0 0.0
  %168 = vmatpush1.msra.mxu0 0.0
  %169 = vmatprep.subr.mxu0 0.0
  %170 = vmatpush1.msra.mxu0 0.0
  %171 = vmatprep.subr.mxu0 0.0
  %172 = vmatpush1.msra.mxu0 0.0
  %173 = vmatprep.subr.mxu0 0.0
  %174 = vmatpush1.msra.mxu0 0.0
  %175 = vmatprep.subr.mxu0 0.0
  %176 = vmatpush1.msra.mxu0 0.0
  %177 = vmatprep.subr.mxu0 0.0
  %178 = vmatpush1.msra.mxu0 0.0
  %179 = vmatprep.subr.mxu0 0.0
  %180 = vmatpush1.msra.mxu0 0.0
  %181 = vmatprep.subr.mxu0 0.0
  %182 = vmatpush1.msra.mxu0 0.0
  %183 = vmatprep.subr.mxu0 0.0
  %184 = vmatpush1.msra.mxu0 0.0
  %185 = vmatprep.subr.mxu0 0.0
  %186 = vmatpush1.msra.mxu0 0.0
  %187 = vmatprep.subr.mxu0 0.0
  %188 = vmatpush1.msra.mxu0 0.0
  %189 = vmatprep.subr.mxu0 0.0
  %190 = vmatpush1.msra.mxu0 0.0
  %191 = vmatprep.subr.mxu0 0.0
  %192 = vmatpush1.msra.mxu0 0.0
  %193 = vmatprep.subr.mxu0 0.0
  %194 = vmatpush1.msra.mxu0 0.0
  %195 = vmatprep.subr.mxu0 0.0
  %196 = vmatpush1.msra.mxu0 0.0
  %197 = vmatprep.subr.mxu0 0.0
  %198 = vmatpush1.msra.mxu0 0.0
  %199 = vmatprep.subr.mxu0 0.0
  %200 = vmatpush1.msra.mxu0 0.0
  %201 = vmatprep.subr.mxu0 0.0
  %202 = vmatpush1.msra.mxu0 0.0
  %203 = vmatprep.subr.mxu0 0.0
  %204 = vmatpush1.msra.mxu0 0.0
  %205 = vmatprep.mubr.f32.mxu0 0.0
  %206 = vmatmul.mubr.f32.gmra.mrb[0].mxu0 %v55
  %v207 = vpop.f32.mrb[0].mxu0
  %v208 = vadd.f32 0.0, %v207
  %v209 = vpop.f32.mrb[0].mxu0
  %v210 = vadd.f32 0.0, %v209
  %211 = vdwg.mxu0
  %v212 = vld [vmem:[%s7] sm:$0xf]
  %v214 = vlaneseq
  %v215 = vshrl.u32 %v214, 7
  %v216 = vsub.s32 0, %v215
  %v217 = vrot.slane %v212, %v216
  %v218 = vlaneseq
  %v219 = vshrl.u32 %v218, 7
  %v220 = vsub.s32 1, %v219
  %v221 = vrot.slane %v212, %v220
  %v222 = vlaneseq
  %v223 = vshrl.u32 %v222, 7
  %v224 = vsub.s32 2, %v223
  %v225 = vrot.slane %v212, %v224
  %v226 = vlaneseq
  %v227 = vshrl.u32 %v226, 7
  %v228 = vsub.s32 3, %v227
  %v229 = vrot.slane %v212, %v228
  %v234 = vmul.f32 %v137, %v217
  %v235 = vmul.f32 %v139, %v221
  %v236 = vmul.f32 %v208, %v225
  %v237 = vmul.f32 %v210, %v229
  %v238 = vadd.f32 %v234, %v235
  %v239 = vadd.f32 %v238, %v236
  %v240 = vadd.f32 %v239, %v237
  %241 = vadd.xlane.f32.xlu0 %v240
  %v242 = vpop.xlane.xlu0 %241
  %v243 = vmul.f32 %v242, 0.0025510204
  %v244 = vmul.f32 %v234, %v137
  %v245 = vmul.f32 %v235, %v139
  %v246 = vmul.f32 %v236, %v208
  %v247 = vmul.f32 %v237, %v210
  %v248 = vadd.f32 %v244, %v245
  %v249 = vadd.f32 %v248, %v246
  %v250 = vadd.f32 %v249, %v247
  %251 = vadd.xlane.f32.xlu0 %v250
  %v252 = vpop.xlane.xlu0 %251
  %v253 = vmul.f32 %v252, 0.0025510204
  %v254 = vmul.f32 %v243, %v243
  %v255 = vsub.f32 %v253, %v254
  %v256 = vsub.f32 %v137, %v243
  %v257 = vsub.f32 %v139, %v243
  %v258 = vsub.f32 %v208, %v243
  %v259 = vsub.f32 %v210, %v243
  %v260 = vadd.f32 %v255, 1e-05
  %v261 = vrsqrt.pop %v260
  %v262 = vmul.f32 %v256, %v261
  %v263 = vmul.f32 %v257, %v261
  %v264 = vmul.f32 %v258, %v261
  %v265 = vmul.f32 %v259, %v261
  %v266 = vld [vmem:[%s2] sm:$0xff]
  %268 = vset.pattern.permute.xlu0 0
  %269 = vperm.xlu0 %268, %v266
  %v270 = vpop.permute.xlu0 %269
  %v272 = vmul.f32 %v262, %v270
  %v273 = vmul.f32 %v263, %v270
  %v274 = vmul.f32 %v264, %v270
  %v275 = vmul.f32 %v265, %v270
  %v276 = vld [vmem:[%s3] sm:$0xff]
  %278 = vset.pattern.permute.xlu0 0
  %279 = vperm.xlu0 %278, %v276
  %v280 = vpop.permute.xlu0 %279
  %v282 = vadd.f32 %v272, %v280
  %v283 = vadd.f32 %v273, %v280
  %v284 = vadd.f32 %v274, %v280
  %v285 = vadd.f32 %v275, %v280
  %vm286 = vcmp.gt.f32.partialorder %v282, 0.0
  %vm287 = vcmp.gt.f32.partialorder %v283, 0.0
  %vm288 = vcmp.gt.f32.partialorder %v284, 0.0
  %vm289 = vcmp.gt.f32.partialorder %v285, 0.0
  %v290 = vmul.f32 %v282, 0.1
  %v291 = vmul.f32 %v283, 0.1
  %v292 = vmul.f32 %v284, 0.1
  %v293 = vmul.f32 %v285, 0.1
  %v294 = vsel %vm286, %v282, %v290
  %v295 = vsel %vm287, %v283, %v291
  %v296 = vsel %vm288, %v284, %v292
  %v297 = vsel %vm289, %v285, %v293
  %v298 = vmul.f32 %v294, %v217
  %v299 = vmul.f32 %v295, %v221
  %v300 = vmul.f32 %v296, %v225
  %v301 = vmul.f32 %v297, %v229
  %302 = vrot.lane.b32.xlu0 %v298, 127
  %v303 = vpop.permute.xlu0 %302
  %304 = vrot.lane.b32.xlu0 %v299, 127
  %v305 = vpop.permute.xlu0 %304
  %306 = vrot.lane.b32.xlu0 %v300, 127
  %v307 = vpop.permute.xlu0 %306
  %308 = vrot.lane.b32.xlu0 %v301, 127
  %v309 = vpop.permute.xlu0 %308
  %v310 = vlaneseq
  %v311 = vand.u32 %v310, 127
  %vm312 = vcmp.lt.s32.totalorder %v311, 127
  %v313 = vsel %vm312, %v307, %v309
  %v314 = vsel %vm312, %v305, %v307
  %v315 = vsel %vm312, %v303, %v305
  %v316 = vsel %vm312, %v309, %v303
  %317 = vrot.lane.b32.xlu0 %v298, 126
  %v318 = vpop.permute.xlu0 %317
  %319 = vrot.lane.b32.xlu0 %v299, 126
  %v320 = vpop.permute.xlu0 %319
  %321 = vrot.lane.b32.xlu0 %v300, 126
  %v322 = vpop.permute.xlu0 %321
  %323 = vrot.lane.b32.xlu0 %v301, 126
  %v324 = vpop.permute.xlu0 %323
  %vm325 = vcmp.lt.s32.totalorder %v311, 126
  %v326 = vsel %vm325, %v322, %v324
  %v327 = vsel %vm325, %v320, %v322
  %v328 = vsel %vm325, %v318, %v320
  %v329 = vsel %vm325, %v324, %v318
  %330 = vrot.lane.b32.xlu0 %v298, 112
  %v331 = vpop.permute.xlu0 %330
  %332 = vrot.lane.b32.xlu0 %v299, 112
  %v333 = vpop.permute.xlu0 %332
  %334 = vrot.lane.b32.xlu0 %v300, 112
  %v335 = vpop.permute.xlu0 %334
  %336 = vrot.lane.b32.xlu0 %v301, 112
  %v337 = vpop.permute.xlu0 %336
  %vm338 = vcmp.lt.s32.totalorder %v311, 112
  %v339 = vsel %vm338, %v335, %v337
  %v340 = vsel %vm338, %v333, %v335
  %v341 = vsel %vm338, %v331, %v333
  %v342 = vsel %vm338, %v337, %v331
  %343 = vrot.lane.b32.xlu0 %v298, 111
  %v344 = vpop.permute.xlu0 %343
  %345 = vrot.lane.b32.xlu0 %v299, 111
  %v346 = vpop.permute.xlu0 %345
  %347 = vrot.lane.b32.xlu0 %v300, 111
  %v348 = vpop.permute.xlu0 %347
  %349 = vrot.lane.b32.xlu0 %v301, 111
  %v350 = vpop.permute.xlu0 %349
  %vm351 = vcmp.lt.s32.totalorder %v311, 111
  %v352 = vsel %vm351, %v348, %v350
  %v353 = vsel %vm351, %v346, %v348
  %v354 = vsel %vm351, %v344, %v346
  %v355 = vsel %vm351, %v350, %v344
  %356 = vrot.lane.b32.xlu0 %v298, 110
  %v357 = vpop.permute.xlu0 %356
  %358 = vrot.lane.b32.xlu0 %v299, 110
  %v359 = vpop.permute.xlu0 %358
  %360 = vrot.lane.b32.xlu0 %v300, 110
  %v361 = vpop.permute.xlu0 %360
  %362 = vrot.lane.b32.xlu0 %v301, 110
  %v363 = vpop.permute.xlu0 %362
  %vm364 = vcmp.lt.s32.totalorder %v311, 110
  %v365 = vsel %vm364, %v361, %v363
  %v366 = vsel %vm364, %v359, %v361
  %v367 = vsel %vm364, %v357, %v359
  %v368 = vsel %vm364, %v363, %v357
  %369 = vrot.lane.b32.xlu0 %v298, 96
  %v370 = vpop.permute.xlu0 %369
  %371 = vrot.lane.b32.xlu0 %v299, 96
  %v372 = vpop.permute.xlu0 %371
  %373 = vrot.lane.b32.xlu0 %v300, 96
  %v374 = vpop.permute.xlu0 %373
  %375 = vrot.lane.b32.xlu0 %v301, 96
  %v376 = vpop.permute.xlu0 %375
  %vm377 = vcmp.lt.s32.totalorder %v311, 96
  %v378 = vsel %vm377, %v374, %v376
  %v379 = vsel %vm377, %v372, %v374
  %v380 = vsel %vm377, %v370, %v372
  %v381 = vsel %vm377, %v376, %v370
  %382 = vrot.lane.b32.xlu0 %v298, 95
  %v383 = vpop.permute.xlu0 %382
  %384 = vrot.lane.b32.xlu0 %v299, 95
  %v385 = vpop.permute.xlu0 %384
  %386 = vrot.lane.b32.xlu0 %v300, 95
  %v387 = vpop.permute.xlu0 %386
  %388 = vrot.lane.b32.xlu0 %v301, 95
  %v389 = vpop.permute.xlu0 %388
  %vm390 = vcmp.lt.s32.totalorder %v311, 95
  %v391 = vsel %vm390, %v387, %v389
  %v392 = vsel %vm390, %v385, %v387
  %v393 = vsel %vm390, %v383, %v385
  %v394 = vsel %vm390, %v389, %v383
  %395 = vrot.lane.b32.xlu0 %v298, 94
  %v396 = vpop.permute.xlu0 %395
  %397 = vrot.lane.b32.xlu0 %v299, 94
  %v398 = vpop.permute.xlu0 %397
  %399 = vrot.lane.b32.xlu0 %v300, 94
  %v400 = vpop.permute.xlu0 %399
  %401 = vrot.lane.b32.xlu0 %v301, 94
  %v402 = vpop.permute.xlu0 %401
  %vm403 = vcmp.lt.s32.totalorder %v311, 94
  %v404 = vsel %vm403, %v400, %v402
  %v405 = vsel %vm403, %v398, %v400
  %v406 = vsel %vm403, %v396, %v398
  %v407 = vsel %vm403, %v402, %v396
  %v408 = vld [vmem:[%s4] sm:$0xff]
  %vm409 = vcmask 588800
  %v411 = vsel %vm409, %v408, 0
  %413 = vmatprep.subr.mxu0 %v299
  %414 = vmatpush1.msra.mxu0 %v298
  %415 = vmatprep.subr.mxu0 %v314
  %416 = vmatpush1.msra.mxu0 %v315
  %417 = vmatprep.subr.mxu0 %v327
  %418 = vmatpush1.msra.mxu0 %v328
  %419 = vmatprep.subr.mxu0 %v340
  %420 = vmatpush1.msra.mxu0 %v341
  %421 = vmatprep.subr.mxu0 %v353
  %422 = vmatpush1.msra.mxu0 %v354
  %423 = vmatprep.subr.mxu0 %v366
  %424 = vmatpush1.msra.mxu0 %v367
  %425 = vmatprep.subr.mxu0 %v379
  %426 = vmatpush1.msra.mxu0 %v380
  %427 = vmatprep.subr.mxu0 %v392
  %428 = vmatpush1.msra.mxu0 %v393
  %429 = vmatprep.subr.mxu0 %v405
  %430 = vmatpush1.msra.mxu0 %v406
  %431 = vmatprep.subr.mxu0 0.0
  %432 = vmatpush1.msra.mxu0 0.0
  %433 = vmatprep.subr.mxu0 0.0
  %434 = vmatpush1.msra.mxu0 0.0
  %435 = vmatprep.subr.mxu0 0.0
  %436 = vmatpush1.msra.mxu0 0.0
  %437 = vmatprep.subr.mxu0 0.0
  %438 = vmatpush1.msra.mxu0 0.0
  %439 = vmatprep.subr.mxu0 0.0
  %440 = vmatpush1.msra.mxu0 0.0
  %441 = vmatprep.subr.mxu0 0.0
  %442 = vmatpush1.msra.mxu0 0.0
  %443 = vmatprep.subr.mxu0 0.0
  %444 = vmatpush1.msra.mxu0 0.0
  %445 = vmatprep.subr.mxu0 0.0
  %446 = vmatpush1.msra.mxu0 0.0
  %447 = vmatprep.subr.mxu0 0.0
  %448 = vmatpush1.msra.mxu0 0.0
  %449 = vmatprep.subr.mxu0 0.0
  %450 = vmatpush1.msra.mxu0 0.0
  %451 = vmatprep.subr.mxu0 0.0
  %452 = vmatpush1.msra.mxu0 0.0
  %453 = vmatprep.subr.mxu0 0.0
  %454 = vmatpush1.msra.mxu0 0.0
  %455 = vmatprep.subr.mxu0 0.0
  %456 = vmatpush1.msra.mxu0 0.0
  %457 = vmatprep.subr.mxu0 0.0
  %458 = vmatpush1.msra.mxu0 0.0
  %459 = vmatprep.subr.mxu0 0.0
  %460 = vmatpush1.msra.mxu0 0.0
  %461 = vmatprep.subr.mxu0 0.0
  %462 = vmatpush1.msra.mxu0 0.0
  %463 = vmatprep.subr.mxu0 0.0
  %464 = vmatpush1.msra.mxu0 0.0
  %465 = vmatprep.subr.mxu0 0.0
  %466 = vmatpush1.msra.mxu0 0.0
  %467 = vmatprep.subr.mxu0 0.0
  %468 = vmatpush1.msra.mxu0 0.0
  %469 = vmatprep.subr.mxu0 0.0
  %470 = vmatpush1.msra.mxu0 0.0
  %471 = vmatprep.subr.mxu0 0.0
  %472 = vmatpush1.msra.mxu0 0.0
  %473 = vmatprep.subr.mxu0 0.0
  %474 = vmatpush1.msra.mxu0 0.0
  %475 = vmatprep.subr.mxu0 0.0
  %476 = vmatpush1.msra.mxu0 0.0
  %477 = vmatprep.mubr.f32.mxu0 0.0
  %478 = vmatmul.mubr.f32.gmra.mrb[0].mxu0 %v411
  %v479 = vpop.f32.mrb[0].mxu0
  %v480 = vadd.f32 0.0, %v479
  %v481 = vpop.f32.mrb[0].mxu0
  %v482 = vadd.f32 0.0, %v481
  %483 = vdwg.mxu0
  %484 = vmatprep.subr.mxu0 %v301
  %485 = vmatpush1.msra.mxu0 %v300
  %486 = vmatprep.subr.mxu0 %v316
  %487 = vmatpush1.msra.mxu0 %v313
  %488 = vmatprep.subr.mxu0 %v329
  %489 = vmatpush1.msra.mxu0 %v326
  %490 = vmatprep.subr.mxu0 %v342
  %491 = vmatpush1.msra.mxu0 %v339
  %492 = vmatprep.subr.mxu0 %v355
  %493 = vmatpush1.msra.mxu0 %v352
  %494 = vmatprep.subr.mxu0 %v368
  %495 = vmatpush1.msra.mxu0 %v365
  %496 = vmatprep.subr.mxu0 %v381
  %497 = vmatpush1.msra.mxu0 %v378
  %498 = vmatprep.subr.mxu0 %v394
  %499 = vmatpush1.msra.mxu0 %v391
  %500 = vmatprep.subr.mxu0 %v407
  %501 = vmatpush1.msra.mxu0 %v404
  %502 = vmatprep.subr.mxu0 0.0
  %503 = vmatpush1.msra.mxu0 0.0
  %504 = vmatprep.subr.mxu0 0.0
  %505 = vmatpush1.msra.mxu0 0.0
  %506 = vmatprep.subr.mxu0 0.0
  %507 = vmatpush1.msra.mxu0 0.0
  %508 = vmatprep.subr.mxu0 0.0
  %509 = vmatpush1.msra.mxu0 0.0
  %510 = vmatprep.subr.mxu0 0.0
  %511 = vmatpush1.msra.mxu0 0.0
  %512 = vmatprep.subr.mxu0 0.0
  %513 = vmatpush1.msra.mxu0 0.0
  %514 = vmatprep.subr.mxu0 0.0
  %515 = vmatpush1.msra.mxu0 0.0
  %516 = vmatprep.subr.mxu0 0.0
  %517 = vmatpush1.msra.mxu0 0.0
  %518 = vmatprep.subr.mxu0 0.0
  %519 = vmatpush1.msra.mxu0 0.0
  %520 = vmatprep.subr.mxu0 0.0
  %521 = vmatpush1.msra.mxu0 0.0
  %522 = vmatprep.subr.mxu0 0.0
  %523 = vmatpush1.msra.mxu0 0.0
  %524 = vmatprep.subr.mxu0 0.0
  %525 = vmatpush1.msra.mxu0 0.0
  %526 = vmatprep.subr.mxu0 0.0
  %527 = vmatpush1.msra.mxu0 0.0
  %528 = vmatprep.subr.mxu0 0.0
  %529 = vmatpush1.msra.mxu0 0.0
  %530 = vmatprep.subr.mxu0 0.0
  %531 = vmatpush1.msra.mxu0 0.0
  %532 = vmatprep.subr.mxu0 0.0
  %533 = vmatpush1.msra.mxu0 0.0
  %534 = vmatprep.subr.mxu0 0.0
  %535 = vmatpush1.msra.mxu0 0.0
  %536 = vmatprep.subr.mxu0 0.0
  %537 = vmatpush1.msra.mxu0 0.0
  %538 = vmatprep.subr.mxu0 0.0
  %539 = vmatpush1.msra.mxu0 0.0
  %540 = vmatprep.subr.mxu0 0.0
  %541 = vmatpush1.msra.mxu0 0.0
  %542 = vmatprep.subr.mxu0 0.0
  %543 = vmatpush1.msra.mxu0 0.0
  %544 = vmatprep.subr.mxu0 0.0
  %545 = vmatpush1.msra.mxu0 0.0
  %546 = vmatprep.subr.mxu0 0.0
  %547 = vmatpush1.msra.mxu0 0.0
  %548 = vmatprep.mubr.f32.mxu0 0.0
  %549 = vmatmul.mubr.f32.gmra.mrb[0].mxu0 %v411
  %v550 = vpop.f32.mrb[0].mxu0
  %v551 = vadd.f32 0.0, %v550
  %v552 = vpop.f32.mrb[0].mxu0
  %v553 = vadd.f32 0.0, %v552
  %554 = vdwg.mxu0
  %v555 = vld [vmem:[%s8] sm:$0xf]
  %v557 = vlaneseq
  %v558 = vshrl.u32 %v557, 7
  %v559 = vsub.s32 0, %v558
  %v560 = vrot.slane %v555, %v559
  %v561 = vlaneseq
  %v562 = vshrl.u32 %v561, 7
  %v563 = vsub.s32 1, %v562
  %v564 = vrot.slane %v555, %v563
  %v565 = vlaneseq
  %v566 = vshrl.u32 %v565, 7
  %v567 = vsub.s32 2, %v566
  %v568 = vrot.slane %v555, %v567
  %v569 = vlaneseq
  %v570 = vshrl.u32 %v569, 7
  %v571 = vsub.s32 3, %v570
  %v572 = vrot.slane %v555, %v571
  %v577 = vmul.f32 %v480, %v560
  %v578 = vmul.f32 %v482, %v564
  %v579 = vmul.f32 %v551, %v568
  %v580 = vmul.f32 %v553, %v572
  %v581 = vadd.f32 %v577, %v578
  %v582 = vadd.f32 %v581, %v579
  %v583 = vadd.f32 %v582, %v580
  %584 = vadd.xlane.f32.xlu0 %v583
  %v585 = vpop.xlane.xlu0 %584
  %v586 = vmul.f32 %v585, 0.0034722222
  %v587 = vmul.f32 %v577, %v480
  %v588 = vmul.f32 %v578, %v482
  %v589 = vmul.f32 %v579, %v551
  %v590 = vmul.f32 %v580, %v553
  %v591 = vadd.f32 %v587, %v588
  %v592 = vadd.f32 %v591, %v589
  %v593 = vadd.f32 %v592, %v590
  %594 = vadd.xlane.f32.xlu0 %v593
  %v595 = vpop.xlane.xlu0 %594
  %v596 = vmul.f32 %v595, 0.0034722222
  %v597 = vmul.f32 %v586, %v586
  %v598 = vsub.f32 %v596, %v597
  %v599 = vsub.f32 %v480, %v586
  %v600 = vsub.f32 %v482, %v586
  %v601 = vsub.f32 %v551, %v586
  %v602 = vsub.f32 %v553, %v586
  %v603 = vadd.f32 %v598, 1e-05
  %v604 = vrsqrt.pop %v603
  %v605 = vmul.f32 %v599, %v604
  %v606 = vmul.f32 %v600, %v604
  %v607 = vmul.f32 %v601, %v604
  %v608 = vmul.f32 %v602, %v604
  %v609 = vld [vmem:[%s5] sm:$0xff]
  %611 = vset.pattern.permute.xlu0 0
  %612 = vperm.xlu0 %611, %v609
  %v613 = vpop.permute.xlu0 %612
  %v615 = vmul.f32 %v605, %v613
  %v616 = vmul.f32 %v606, %v613
  %v617 = vmul.f32 %v607, %v613
  %v618 = vmul.f32 %v608, %v613
  %v619 = vld [vmem:[%s6] sm:$0xff]
  %621 = vset.pattern.permute.xlu0 0
  %622 = vperm.xlu0 %621, %v619
  %v623 = vpop.permute.xlu0 %622
  %v625 = vadd.f32 %v615, %v623
  %v626 = vadd.f32 %v616, %v623
  %v627 = vadd.f32 %v617, %v623
  %v628 = vadd.f32 %v618, %v623
  %vm629 = vcmp.gt.f32.partialorder %v625, 0.0
  %vm630 = vcmp.gt.f32.partialorder %v626, 0.0
  %vm631 = vcmp.gt.f32.partialorder %v627, 0.0
  %vm632 = vcmp.gt.f32.partialorder %v628, 0.0
  %v633 = vmul.f32 %v625, 0.1
  %v634 = vmul.f32 %v626, 0.1
  %v635 = vmul.f32 %v627, 0.1
  %v636 = vmul.f32 %v628, 0.1
  %v637 = vsel %vm629, %v625, %v633
  %v638 = vsel %vm630, %v626, %v634
  %v639 = vsel %vm631, %v627, %v635
  %v640 = vsel %vm632, %v628, %v636
  %641 = vst [vmem:[%s9] sm:$0xff] %v637
  %642 = vst [vmem:[%s9 + $0x8] sm:$0xff] %v638
  %643 = vst [vmem:[%s9 + $0x10] sm:$0xff] %v639
  %644 = vst [vmem:[%s9 + $0x18] sm:$0xff] %v640
  // Predicated region
  $region38: #{convolution_block.1} parent=0 // pred_check
    _
  $region39: #{convolution_block.1} parent=0 // pred_check_branch
    %646 = sbr.rel (0) target = $region41
  $region40: #{convolution_block.1} parent=0 // pred_region
    _
  $region41: #{convolution_block.1} parent=0 // pred_fallthru
    _
  // Predicated region
  $region42: #{convolution_block.1} parent=0 // pred_check
    _
  $region43: #{convolution_block.1} parent=0 // pred_check_branch
    %648 = sbr.rel (0) target = $region45
  $region44: #{convolution_block.1} parent=0 // pred_region
    _
  $region45: #{convolution_block.1} parent=0 // pred_fallthru
    _

</llo_original>
